<compile_context>
chip_gen: v6e
topology: v6e:2x2x1
jax: 0.10.0
libtpu: 0.0.40
codegen_flags: <defaults>
</compile_context>

<pallas_src>
import functools

import jax
import jax.numpy as jnp
from jax.experimental import pallas as pl
from jax.experimental.pallas import tpu as pltpu


def _round_up(a: int, b: int) -> int:
    return ((a + b - 1) // b) * b


def _tv_kernel(x_ref, o_ref, acc_h_ref, acc_w_ref, *, W, scale_h, scale_w):
    i = pl.program_id(1)          # inner (reduction) axis

    @pl.when(i == 0)
    def _init():
        acc_h_ref[...] = jnp.zeros_like(acc_h_ref)
        acc_w_ref[...] = jnp.zeros_like(acc_w_ref)

    xs = x_ref[...].astype(jnp.float32)                       # (G, 8, H*W)
    col = jax.lax.broadcasted_iota(jnp.int32, xs.shape, 2)

    # Vertical (H) differences: flattened column j pairs with j - W.
    dh = xs - pltpu.roll(xs, W, axis=2)
    dh = jnp.where(col >= W, dh, 0.0)
    # Horizontal (W) differences: column j pairs with j - 1; row starts masked.
    dw = xs - pltpu.roll(xs, 1, axis=2)
    dw = jnp.where(col % W != 0, dw, 0.0)

    # Per-step reduce only over the leading group axis: pure VPU adds into the
    # lane-dense accumulators; no cross-lane reduce / no output store per step.
    acc_h_ref[...] += jnp.sum(dh * dh, axis=0)
    acc_w_ref[...] += jnp.sum(dw * dw, axis=0)

    @pl.when(i == pl.num_programs(1) - 1)
    def _finalize():
        h_tv = jnp.sum(acc_h_ref[...])      # single cross-lane reduce per split
        w_tv = jnp.sum(acc_w_ref[...])
        val = scale_h * h_tv + scale_w * w_tv
        o_ref[...] = jnp.full(o_ref.shape, val, dtype=o_ref.dtype)


def tv_loss(x: jax.Array, weight: float = 1.0,
            target_block_bytes: int = 2 * 1024 * 1024) -> jax.Array:
    """Total-variation loss, identical semantics to PyTorch TVLoss.forward."""
    B, C, H, W = x.shape
    BC = B * C
    HW = H * W
    count_h = C * (H - 1) * W               # _tensor_size(x[:, :, 1:, :])
    count_w = C * H * (W - 1)               # _tensor_size(x[:, :, :, 1:])
    # Mirror PyTorch's 0/0 -> nan instead of raising ZeroDivisionError.
    scale_h = (weight / (count_h * B)) if count_h > 0 else float("nan")
    scale_w = (weight / (count_w * B)) if count_w > 0 else float("nan")

    # v7x has 2 TensorCores: emit independent per-core partials (summed in the
    # wrapper) so the reduction is not pinned to one core. Harmless on v5e/v6e.
    NSPLIT = 2 if BC >= 16 else 1

    itemsize = jnp.dtype(x.dtype).itemsize
    tbc_bytes = (target_block_bytes // (HW * itemsize)) // 8 * 8   # by VMEM budget
    tbc_work = _round_up(pl.cdiv(BC, NSPLIT), 8)                   # by available work
    TBC = max(8, min(tbc_bytes, tbc_work))       # channel-slabs per grid step
    nblk = pl.cdiv(BC, NSPLIT * TBC)             # inner reduction steps per split
    BC_pad = NSPLIT * nblk * TBC                 # zero-padded slabs contribute 0
    G = TBC // 8

    x2 = x.reshape(BC, HW)
    if BC_pad != BC:
        x2 = jnp.pad(x2, ((0, BC_pad - BC), (0, 0)))
    x3 = x2.reshape(BC_pad // 8, 8, HW)

    kernel = functools.partial(_tv_kernel, W=W, scale_h=scale_h, scale_w=scale_w)

    in_block_bytes = TBC * HW * itemsize
    acc_bytes = 2 * 8 * HW * 4
    vmem_limit = int(min(max(3 * (2 * in_block_bytes + acc_bytes), 32 << 20),
                         56 << 20))

    out = pl.pallas_call(
        kernel,
        out_shape=jax.ShapeDtypeStruct((NSPLIT, 8, 128), jnp.float32),
        grid_spec=pltpu.PrefetchScalarGridSpec(
            num_scalar_prefetch=0,
            grid=(NSPLIT, nblk),
            in_specs=[pl.BlockSpec((G, 8, HW),
                                   lambda p, i: (p * nblk + i, 0, 0))],
            out_specs=pl.BlockSpec((1, 8, 128), lambda p, i: (p, 0, 0)),
            scratch_shapes=[pltpu.VMEM((8, HW), jnp.float32),
                            pltpu.VMEM((8, HW), jnp.float32)],
        ),
        compiler_params=pltpu.CompilerParams(
            dimension_semantics=("parallel", "arbitrary"),
            vmem_limit_bytes=vmem_limit,
        ),
    )(x3)
    return jnp.sum(out[:, 0, 0])


def tv_loss_ref(x: jax.Array, weight: float = 1.0) -> jax.Array:
    """Pure-JAX reference (mirrors the PyTorch code 1:1)."""
    B, C, H, W = x.shape
    count_h = C * (H - 1) * W
    count_w = C * H * (W - 1)
    h_tv = jnp.sum((x[:, :, 1:, :] - x[:, :, :H - 1, :]) ** 2)
    w_tv = jnp.sum((x[:, :, :, 1:] - x[:, :, :, :W - 1]) ** 2)
    return weight * (h_tv / count_h + w_tv / count_w) / B


if __name__ == "__main__":
    # Primary small case matching the module's expected input layout.
    B, C, H, W = 2, 4, 16, 16
    x = jax.random.normal(jax.random.PRNGKey(0), (B, C, H, W), dtype=jnp.float32)
    out = jax.block_until_ready(tv_loss(x, weight=1.0))
    ref = jax.block_until_ready(tv_loss_ref(x, weight=1.0))
    assert jnp.allclose(out, ref, rtol=1e-5, atol=1e-6), (out, ref)

    # Exercise the multi-block reduction, channel padding, and the two-way
    # ("parallel") split path with a deliberately tiny block-size target.
    B2, C2, H2, W2 = 2, 12, 32, 32
    x2 = jax.random.normal(jax.random.PRNGKey(0), (B2, C2, H2, W2),
                           dtype=jnp.float32)
    out2 = jax.block_until_ready(tv_loss(x2, weight=0.5, target_block_bytes=8192))
    ref2 = jax.block_until_ready(tv_loss_ref(x2, weight=0.5))
    assert jnp.allclose(out2, ref2, rtol=1e-5, atol=1e-6), (out2, ref2)

    print("KERNEL_OK")
</pallas_src>

<mosaic_0001>
module attributes {stable_mosaic.version = 11 : i64} {
  func.func @_tv_kernel(%arg0: i32, %arg1: i32, %arg2: memref<1x8x256xf32, #tpu.memory_space<vmem>>, %arg3: memref<1x8x128xf32, #tpu.memory_space<vmem>>, %arg4: memref<8x256xf32, #tpu.memory_space<vmem>>, %arg5: memref<8x256xf32, #tpu.memory_space<vmem>>) attributes {dimension_semantics = [#tpu.dimension_semantics<parallel>, #tpu.dimension_semantics<arbitrary>], iteration_bounds = array<i64: 1, 1>, scalar_prefetch = 0 : i64, scratch_operands = 2 : i64, tpu.core_type = #tpu.core_type<tc>, window_params = [{transform_indices = @transform_0, window_bounds = array<i64: 1, 8, 256>}, {transform_indices = @transform_1, window_bounds = array<i64: 1, 8, 128>}]} {
    %c0_i32 = arith.constant 0 : i32
    %0 = arith.cmpi eq, %arg1, %c0_i32 : i32
    %1 = arith.extui %0 : i1 to i32
    %c0_i32_0 = arith.constant 0 : i32
    %2 = arith.cmpi ne, %1, %c0_i32_0 : i32
    scf.if %2 {
      %cst_24 = arith.constant 0.000000e+00 : f32
      %46 = vector.broadcast %cst_24 : f32 to vector<8x256xf32>
      %c0_25 = arith.constant 0 : index
      %c0_26 = arith.constant 0 : index
      %47 = vector.load %arg4[%c0_25, %c0_26] : memref<8x256xf32, #tpu.memory_space<vmem>>, vector<8x256xf32>
      tpu.vector_store %arg4[%c0_25, %c0_26], %46 {strides = array<i32>} : memref<8x256xf32, #tpu.memory_space<vmem>>, vector<8x256xf32>,
      %cst_27 = arith.constant 0.000000e+00 : f32
      %48 = vector.broadcast %cst_27 : f32 to vector<8x256xf32>
      %c0_28 = arith.constant 0 : index
      %c0_29 = arith.constant 0 : index
      %49 = vector.load %arg5[%c0_28, %c0_29] : memref<8x256xf32, #tpu.memory_space<vmem>>, vector<8x256xf32>
      tpu.vector_store %arg5[%c0_28, %c0_29], %48 {strides = array<i32>} : memref<8x256xf32, #tpu.memory_space<vmem>>, vector<8x256xf32>,
    } else {
    }
    %c0 = arith.constant 0 : index
    %c0_1 = arith.constant 0 : index
    %c0_2 = arith.constant 0 : index
    %3 = vector.load %arg2[%c0, %c0_1, %c0_2] : memref<1x8x256xf32, #tpu.memory_space<vmem>>, vector<1x8x256xf32>
    %4 = tpu.iota {dimensions = array<i32: 2>} : vector<1x8x256xi32>
    %c16_i32 = arith.constant 16 : i32
    %5 = tpu.dynamic_rotate %3 by %c16_i32 dim 2 : vector<1x8x256xf32>, i32 -> vector<1x8x256xf32>
    %6 = arith.subf %3, %5 : vector<1x8x256xf32>
    %c16_i32_3 = arith.constant 16 : i32
    %7 = vector.broadcast %c16_i32_3 : i32 to vector<1x8x256xi32>
    %8 = arith.cmpi sge, %4, %7 : vector<1x8x256xi32>
    %cst = arith.constant 0.000000e+00 : f32
    %9 = vector.broadcast %cst : f32 to vector<1x8x256xf32>
    %10 = arith.select %8, %6, %9 : vector<1x8x256xi1>, vector<1x8x256xf32>
    %c1_i32 = arith.constant 1 : i32
    %11 = tpu.dynamic_rotate %3 by %c1_i32 dim 2 : vector<1x8x256xf32>, i32 -> vector<1x8x256xf32>
    %12 = arith.subf %3, %11 : vector<1x8x256xf32>
    %c16_i32_4 = arith.constant 16 : i32
    %c0_i32_5 = arith.constant 0 : i32
    %13 = arith.cmpi eq, %c16_i32_4, %c0_i32_5 : i32
    %c1_i32_6 = arith.constant 1 : i32
    %14 = arith.select %13, %c1_i32_6, %c16_i32_4 : i32
    %15 = vector.broadcast %14 : i32 to vector<1x8x256xi32>
    %16 = arith.remsi %4, %15 : vector<1x8x256xi32>
    %c0_i32_7 = arith.constant 0 : i32
    %17 = vector.broadcast %c0_i32_7 : i32 to vector<1x8x256xi32>
    %18 = arith.cmpi ne, %16, %17 : vector<1x8x256xi32>
    %c0_i32_8 = arith.constant 0 : i32
    %19 = vector.broadcast %c0_i32_8 : i32 to vector<1x8x256xi32>
    %20 = arith.cmpi slt, %16, %19 : vector<1x8x256xi32>
    %c0_i32_9 = arith.constant 0 : i32
    %21 = arith.cmpi slt, %14, %c0_i32_9 : i32
    %22 = vector.broadcast %21 : i1 to vector<1x8x256xi1>
    %23 = vector.broadcast %22 : vector<1x8x256xi1> to vector<1x8x256xi1>
    %24 = arith.xori %20, %23 : vector<1x8x256xi1>
    %25 = arith.andi %24, %18 : vector<1x8x256xi1>
    %26 = vector.broadcast %14 : i32 to vector<1x8x256xi32>
    %27 = arith.addi %16, %26 : vector<1x8x256xi32>
    %28 = arith.select %25, %27, %16 : vector<1x8x256xi1>, vector<1x8x256xi32>
    %c0_i32_10 = arith.constant 0 : i32
    %29 = vector.broadcast %c0_i32_10 : i32 to vector<1x8x256xi32>
    %30 = arith.cmpi ne, %28, %29 : vector<1x8x256xi32>
    %cst_11 = arith.constant 0.000000e+00 : f32
    %31 = vector.broadcast %cst_11 : f32 to vector<1x8x256xf32>
    %32 = arith.select %30, %12, %31 : vector<1x8x256xi1>, vector<1x8x256xf32>
    %c0_12 = arith.constant 0 : index
    %c0_13 = arith.constant 0 : index
    %33 = vector.load %arg4[%c0_12, %c0_13] : memref<8x256xf32, #tpu.memory_space<vmem>>, vector<8x256xf32>
    %34 = arith.mulf %10, %10 : vector<1x8x256xf32>
    %cst_14 = arith.constant dense<0.000000e+00> : vector<8x256xf32>
    %35 = vector.multi_reduction <add>, %34, %cst_14 [0] : vector<1x8x256xf32> to vector<8x256xf32>
    %36 = arith.addf %33, %35 : vector<8x256xf32>
    %c0_15 = arith.constant 0 : index
    %c0_16 = arith.constant 0 : index
    %37 = vector.load %arg4[%c0_15, %c0_16] : memref<8x256xf32, #tpu.memory_space<vmem>>, vector<8x256xf32>
    tpu.vector_store %arg4[%c0_15, %c0_16], %36 {strides = array<i32>} : memref<8x256xf32, #tpu.memory_space<vmem>>, vector<8x256xf32>,
    %c0_17 = arith.constant 0 : index
    %c0_18 = arith.constant 0 : index
    %38 = vector.load %arg5[%c0_17, %c0_18] : memref<8x256xf32, #tpu.memory_space<vmem>>, vector<8x256xf32>
    %39 = arith.mulf %32, %32 : vector<1x8x256xf32>
    %cst_19 = arith.constant dense<0.000000e+00> : vector<8x256xf32>
    %40 = vector.multi_reduction <add>, %39, %cst_19 [0] : vector<1x8x256xf32> to vector<8x256xf32>
    %41 = arith.addf %38, %40 : vector<8x256xf32>
    %c0_20 = arith.constant 0 : index
    %c0_21 = arith.constant 0 : index
    %42 = vector.load %arg5[%c0_20, %c0_21] : memref<8x256xf32, #tpu.memory_space<vmem>>, vector<8x256xf32>
    tpu.vector_store %arg5[%c0_20, %c0_21], %41 {strides = array<i32>} : memref<8x256xf32, #tpu.memory_space<vmem>>, vector<8x256xf32>,
    %c0_i32_22 = arith.constant 0 : i32
    %43 = arith.cmpi eq, %arg1, %c0_i32_22 : i32
    %44 = arith.extui %43 : i1 to i32
    %c0_i32_23 = arith.constant 0 : i32
    %45 = arith.cmpi ne, %44, %c0_i32_23 : i32
    scf.if %45 {
      %c0_24 = arith.constant 0 : index
      %c0_25 = arith.constant 0 : index
      %46 = vector.load %arg4[%c0_24, %c0_25] : memref<8x256xf32, #tpu.memory_space<vmem>>, vector<8x256xf32>
      %47 = vector.shape_cast %46 : vector<8x256xf32> to vector<1x8x256xf32>
      %cst_26 = arith.constant dense<0.000000e+00> : vector<1xf32>
      %48 = vector.multi_reduction <add>, %47, %cst_26 [1, 2] : vector<1x8x256xf32> to vector<1xf32>
      %49 = vector.shape_cast %48 : vector<1xf32> to vector<1x1x1xf32>
      %50 = vector.extract %49[0, 0, 0] : f32 from vector<1x1x1xf32>
      %c0_27 = arith.constant 0 : index
      %c0_28 = arith.constant 0 : index
      %51 = vector.load %arg5[%c0_27, %c0_28] : memref<8x256xf32, #tpu.memory_space<vmem>>, vector<8x256xf32>
      %52 = vector.shape_cast %51 : vector<8x256xf32> to vector<1x8x256xf32>
      %cst_29 = arith.constant dense<0.000000e+00> : vector<1xf32>
      %53 = vector.multi_reduction <add>, %52, %cst_29 [1, 2] : vector<1x8x256xf32> to vector<1xf32>
      %54 = vector.shape_cast %53 : vector<1xf32> to vector<1x1x1xf32>
      %55 = vector.extract %54[0, 0, 0] : f32 from vector<1x1x1xf32>
      %cst_30 = arith.constant 5.2083336E-4 : f32
      %56 = arith.mulf %cst_30, %50 : f32
      %cst_31 = arith.constant 5.2083336E-4 : f32
      %57 = arith.mulf %cst_31, %55 : f32
      %58 = arith.addf %56, %57 : f32
      %59 = vector.broadcast %58 : f32 to vector<1x8x128xf32>
      %c0_32 = arith.constant 0 : index
      %c0_33 = arith.constant 0 : index
      %c0_34 = arith.constant 0 : index
      %60 = vector.load %arg3[%c0_32, %c0_33, %c0_34] : memref<1x8x128xf32, #tpu.memory_space<vmem>>, vector<1x8x128xf32>
      tpu.vector_store %arg3[%c0_32, %c0_33, %c0_34], %59 {strides = array<i32>} : memref<1x8x128xf32, #tpu.memory_space<vmem>>, vector<1x8x128xf32>,
    } else {
    }
    return
  }
  func.func @transform_0(%arg0: i32, %arg1: i32) -> (i32, i32, i32) {
    %c1_i32 = arith.constant 1 : i32
    %0 = arith.muli %arg0, %c1_i32 : i32
    %1 = arith.addi %0, %arg1 : i32
    %c0_i32 = arith.constant 0 : i32
    %c0_i32_0 = arith.constant 0 : i32
    %c0_i32_1 = arith.constant 0 : i32
    return %1, %c0_i32, %c0_i32_0 : i32, i32, i32
  }
  func.func @transform_1(%arg0: i32, %arg1: i32) -> (i32, i32, i32) {
    %c0_i32 = arith.constant 0 : i32
    %c0_i32_0 = arith.constant 0 : i32
    %c0_i32_1 = arith.constant 0 : i32
    return %arg0, %c0_i32, %c0_i32_0 : i32, i32, i32
  }
}

</mosaic_0001>

<llo_original>
// kernel: tpu_custom_call.1
$region0: #{tpu_custom_call.1}
  #allocation0 [shape = 'u32[]', space=smem, size = 0x4, offset = 0x4, fixed_abs, tag = 'smem constant byte address 0x4 - core index']
  #allocation1 [shape = 'u32[144,128]{1,0:T(1,128)}', space=vmem, size = 0x12000, scoped, tag = 'internal scratch']
  #allocation2 [shape = 'f32[8,256]{1,0:T(8,128)}', space=vmem, size = 0x2000, scoped, tag = 'scratch operand']
  #allocation3 [shape = 'f32[8,256]{1,0:T(8,128)}', space=vmem, size = 0x2000, scoped, tag = 'scratch operand']
  %s0 = inlined_call_operand.hbm [shape: f32[1,8,256], index: 0, kind: input, shape index: {}]
  %s1 = inlined_call_operand.hbm [shape: f32[1,8,128], index: 1, kind: output, shape index: {}]
  %s2 = sld [smem:[#allocation0]]
  $region26: #{tpu_custom_call.1} parent=0
    _
  %s4 = ssub.s32 1, %s2
  %s5 = scalar_select 0, %s4, %s2
  $region1: #{tpu_custom_call.1} parent=0
    #allocation4 [shape = 'u8[8192]{0}', space=vmem, size = 0x2000, scoped, tag = 'input window, operand 0, single buffered']
    #allocation5 [shape = 's32[1]{0}', space=sflag, size = 0x4, scoped, tag = 'scoped memory for tpu_custom_call.1']
    #allocation6 [shape = 's32[1]{0}', space=sflag, size = 0x4, scoped, tag = 'scoped memory for tpu_custom_call.1']
    #allocation7 [shape = 'u8[4096]{0}', space=vmem, size = 0x1000, scoped, tag = 'output window, operand 0, single buffered']
    %6 = vsyncpa [#allocation5], 0
    %7 = vsyncpa [#allocation6], 0
    // Predicated region
    $region2: #{tpu_custom_call.1} parent=1 // pred_check
      _
    $region3: #{tpu_custom_call.1} parent=1 // pred_check_branch
      %9 = sbr.rel (0) target = $region5
    $region4: #{tpu_custom_call.1} parent=1 // pred_region
      %s10 = sadd.s32 0, 0
      %s12 = ssub.s32 256, 256
      %13 = vsyncadd [#allocation5], %s12
      %s14 = smul.addr %s10, 2
      %s15 = smul.addr %s14, 128
      %s16 = scalar_lea.hbm %s0, %s15
      %s18 = sshll.u32 [#allocation4], 4
      %s19 = int_to_ptr.vmem [resolvable:$true] %s18
      %21 = dma.hbm_to_vmem [thread:$0]  %s16, 256, %s19, [#allocation5]
    $region5: #{tpu_custom_call.1} parent=1 // pred_fallthru
      _
    // Predicated region
    $region6: #{tpu_custom_call.1} parent=1 // pred_check
      _
    $region7: #{tpu_custom_call.1} parent=1 // pred_check_branch
      %23 = sbr.rel (0) target = $region9
    $region8: #{tpu_custom_call.1} parent=1 // pred_region
      %24 = dma.done [#allocation5], 256
    $region9: #{tpu_custom_call.1} parent=1 // pred_fallthru
      _
    %s25 = sadd.s32 0, 0
    %p26 = scmp.eq.s32.totalorder 0, 0
    // Predicated region
    $region10: #{tpu_custom_call.1} parent=1 // pred_check
      %p27 = pneg %p26
    $region11: #{tpu_custom_call.1} parent=1 // pred_check_branch
      %29 = sbr.rel (%p27) target = $region13
    $region12: #{tpu_custom_call.1} parent=1 // pred_region
      %30 = vst [vmem:[#allocation2] sm:$0xff] 0.0
      %31 = vst [vmem:[#allocation2 + $0x8] sm:$0xff] 0.0
      %32 = vst [vmem:[#allocation3] sm:$0xff] 0.0
      %33 = vst [vmem:[#allocation3 + $0x8] sm:$0xff] 0.0
    $region13: #{tpu_custom_call.1} parent=1 // pred_fallthru
      _
    %v34 = vld [vmem:[#allocation4] sm:$0xff]
    %v35 = vld [vmem:[#allocation4 + $0x8] sm:$0xff]
    %v36 = vlaneseq
    %v37 = vand.u32 %v36, 127
    %v38 = vadd.s32 %v37, 128
    %39 = vrot.lane.b32.xlu0 %v34, 16
    %v40 = vpop.permute.xlu0 %39
    %41 = vrot.lane.b32.xlu0 %v35, 16
    %v42 = vpop.permute.xlu0 %41
    %vm43 = vcmp.lt.s32.totalorder %v37, 16
    %v44 = vsel %vm43, %v40, %v42
    %v45 = vsel %vm43, %v42, %v40
    %v46 = vsub.f32 %v34, %v45
    %v47 = vsub.f32 %v35, %v44
    %vm48 = vcmp.ge.s32.totalorder %v37, 16
    %vm49 = vcmp.ge.s32.totalorder %v38, 16
    %v50 = vsel %vm48, %v46, 0.0
    %v51 = vsel %vm49, %v47, 0.0
    %52 = vrot.lane.b32.xlu0 %v34, 1
    %v53 = vpop.permute.xlu0 %52
    %54 = vrot.lane.b32.xlu0 %v35, 1
    %v55 = vpop.permute.xlu0 %54
    %vm56 = vcmp.lt.s32.totalorder %v37, 1
    %v57 = vsel %vm56, %v53, %v55
    %v58 = vsel %vm56, %v55, %v53
    %v59 = vsub.f32 %v34, %v58
    %v60 = vsub.f32 %v35, %v57
    %vm61 = vcmp.lt.s32.totalorder %v37, 0
    %v62 = vsub.s32 0, %v37
    %v63 = vsel %vm61, %v62, %v37
    %v64 = vshrl.u32 %v63, 4
    %v65 = vand.u32 %v63, 15
    %v66 = vsub.s32 0, %v65
    %v67 = vsel %vm61, %v66, %v65
    %vm68 = vcmp.lt.s32.totalorder %v38, 0
    %v69 = vsub.s32 0, %v38
    %v70 = vsel %vm68, %v69, %v38
    %v71 = vshrl.u32 %v70, 4
    %v72 = vand.u32 %v70, 15
    %v73 = vsub.s32 0, %v72
    %v74 = vsel %vm68, %v73, %v72
    %vm75 = vcmp.ne.s32.totalorder %v67, 0
    %vm76 = vcmp.ne.s32.totalorder %v74, 0
    %vm77 = vcmp.lt.s32.totalorder %v67, 0
    %vm78 = vcmp.lt.s32.totalorder %v74, 0
    %vm79 = vmand %vm77, %vm75
    %vm80 = vmand %vm78, %vm76
    %v81 = vadd.s32 %v67, 16
    %v82 = vadd.s32 %v74, 16
    %v83 = vsel %vm79, %v81, %v67
    %v84 = vsel %vm80, %v82, %v74
    %vm85 = vcmp.ne.s32.totalorder %v83, 0
    %vm86 = vcmp.ne.s32.totalorder %v84, 0
    %v87 = vsel %vm85, %v59, 0.0
    %v88 = vsel %vm86, %v60, 0.0
    %v89 = vld [vmem:[#allocation2] sm:$0xff]
    %v90 = vld [vmem:[#allocation2 + $0x8] sm:$0xff]
    %v91 = vmul.f32 %v50, %v50
    %v92 = vmul.f32 %v51, %v51
    %v93 = vadd.f32 %v91, 0.0
    %v94 = vadd.f32 %v92, 0.0
    %v95 = vadd.f32 %v89, %v93
    %v96 = vadd.f32 %v90, %v94
    %97 = vst [vmem:[#allocation2] sm:$0xff] %v95
    %98 = vst [vmem:[#allocation2 + $0x8] sm:$0xff] %v96
    %v99 = vld [vmem:[#allocation3] sm:$0xff]
    %v100 = vld [vmem:[#allocation3 + $0x8] sm:$0xff]
    %v101 = vmul.f32 %v87, %v87
    %v102 = vmul.f32 %v88, %v88
    %v103 = vadd.f32 %v101, 0.0
    %v104 = vadd.f32 %v102, 0.0
    %v105 = vadd.f32 %v99, %v103
    %v106 = vadd.f32 %v100, %v104
    %107 = vst [vmem:[#allocation3] sm:$0xff] %v105
    %108 = vst [vmem:[#allocation3 + $0x8] sm:$0xff] %v106
    // Predicated region
    $region14: #{tpu_custom_call.1} parent=1 // pred_check
      %p109 = pneg %p26
    $region15: #{tpu_custom_call.1} parent=1 // pred_check_branch
      %111 = sbr.rel (%p109) target = $region17
    $region16: #{tpu_custom_call.1} parent=1 // pred_region
      %v112 = vld [vmem:[#allocation2] sm:$0xff]
      %v113 = vld [vmem:[#allocation2 + $0x8] sm:$0xff]
      %v114 = vadd.f32 %v112, %v113
      %115 = vadd.xlane.f32.xlu0 %v114
      %v116 = vpop.xlane.xlu0 %115
      %v117 = vrot.slane %v116, 4
      %v118 = vadd.f32 %v116, %v117
      %v119 = vrot.slane %v118, 2
      %v120 = vadd.f32 %v118, %v119
      %v121 = vrot.slane %v120, 1
      %v122 = vadd.f32 %v120, %v121
      %s123 = vtos %v122
      %v124 = vld [vmem:[#allocation3] sm:$0xff]
      %v125 = vld [vmem:[#allocation3 + $0x8] sm:$0xff]
      %v126 = vadd.f32 %v124, %v125
      %127 = vadd.xlane.f32.xlu0 %v126
      %v128 = vpop.xlane.xlu0 %127
      %v129 = vrot.slane %v128, 4
      %v130 = vadd.f32 %v128, %v129
      %v131 = vrot.slane %v130, 2
      %v132 = vadd.f32 %v130, %v131
      %v133 = vrot.slane %v132, 1
      %v134 = vadd.f32 %v132, %v133
      %s135 = vtos %v134
      %s136 = smul.f32 %s123, 0.00052083336
      %s137 = smul.f32 %s135, 0.00052083336
      %s138 = sadd.f32 %s136, %s137
      %v139 = vstv %s138
      %140 = vst [vmem:[#allocation7] sm:$0xff] %v139
    $region17: #{tpu_custom_call.1} parent=1 // pred_fallthru
      _
    // Predicated region
    $region18: #{tpu_custom_call.1} parent=1 // pred_check
      _
    $region19: #{tpu_custom_call.1} parent=1 // pred_check_branch
      %142 = sbr.rel (0) target = $region21
    $region20: #{tpu_custom_call.1} parent=1 // pred_region
      %s144 = ssub.s32 128, 128
      %145 = vsyncadd [#allocation6], %s144
      %s147 = sshll.u32 [#allocation7], 4
      %s148 = int_to_ptr.vmem [resolvable:$true] %s147
      %150 = dma.vmem_to_hbm [thread:$0]  %s148, 128, %s1, [#allocation6]
    $region21: #{tpu_custom_call.1} parent=1 // pred_fallthru
      _
    // Predicated region
    $region22: #{tpu_custom_call.1} parent=1 // pred_check
      _
    $region23: #{tpu_custom_call.1} parent=1 // pred_check_branch
      %152 = sbr.rel (0) target = $region25
    $region24: #{tpu_custom_call.1} parent=1 // pred_region
      %153 = dma.done [#allocation6], 128
    $region25: #{tpu_custom_call.1} parent=1 // pred_fallthru
      _
    %154 = vsyncpa [#allocation5], 1
    %155 = vsyncpa [#allocation6], 1

</llo_original>
